<compile_context>
chip_gen: v7x
topology: tpu7x:2x2x1
jax: 0.10.0
libtpu: 0.0.40
codegen_flags: <defaults>
</compile_context>

<pallas_src>
import functools
import math

import jax
import jax.numpy as jnp
from jax.experimental import pallas as pl
from jax.experimental.pallas import tpu as pltpu


_LANE = 128
_SUBLANE = 8


def _round_up(x, m):
    return ((x + m - 1) // m) * m


# --------------------------------------------------------------------------
# Fused MLP kernel: all Linear(+activation) layers in one kernel body.
# --------------------------------------------------------------------------
def _fused_mlp_kernel(x_ref, *refs, n_layers, st, b_offsets, b_widths):
    # refs = (w_0, ..., w_{L-1}, b_all, o_ref)
    # x_ref : [tile_b, Din]                 f32 batch tile (streamed)
    # w_i   : [K_i, N_i]                    bf16 (or f32), resident across grid
    # b_all : [1, sum(N_i) (lane padded)]   f32, all biases concatenated
    # o_ref : [tile_b, Dout]
    w_refs = refs[:n_layers]
    b_ref = refs[n_layers]
    o_ref = refs[n_layers + 1]

    h = x_ref[...].astype(jnp.float32)
    for i in range(n_layers):  # unrolled: per-layer shapes differ
        w = w_refs[i][...]
        # MXU matmul: bf16 operands, f32 accumulate.
        y = jnp.dot(h.astype(w.dtype), w, preferred_element_type=jnp.float32)
        off, width = b_offsets[i], b_widths[i]
        y = y + b_ref[:, off:off + width]  # [1, N_i] broadcasts over rows
        if i < n_layers - 1:
            h = jnp.tanh(y)  # hidden activation (EUP slot, hidden under MXU)
        else:
            if st:
                # numerically stable softplus(y) + 1e-6 == F.softplus(y) + 1e-6
                y = jnp.logaddexp(jnp.float32(0.0), y) + jnp.float32(1e-6)
            h = y
    o_ref[...] = h.astype(o_ref.dtype)


# --------------------------------------------------------------------------
# Fnn module (JAX parameter container, single fused Pallas forward)
# --------------------------------------------------------------------------
class FnnPallas:
    """JAX/Pallas port of `Fnn(layers_size, st, dropout)` (forward / eval)."""

    def __init__(self, layers_size, st=False, dropout=False, key=None,
                 use_bf16=True):
        if len(layers_size) < 4:
            raise ValueError("网络结构太浅啦")
        self.layers_size = list(layers_size)
        self.st = st
        # TODO(synk): training-mode Dropout(p=0.1) not applied (eval semantics).
        self.dropout = dropout
        self.use_bf16 = use_bf16
        if key is None:
            key = jax.random.PRNGKey(0)

        w_dtype = jnp.bfloat16 if use_bf16 else jnp.float32
        dims = self.layers_size
        n_layers = len(dims) - 1

        # Kernel-side weight shapes:
        #   K dim: logical for layer 0 (matches unpadded x), lane-padded after.
        #   N dim: lane-padded for hidden layers, logical for the output layer.
        self.k_dims = [dims[0]] + [_round_up(d, _LANE) for d in dims[1:-1]]
        self.n_dims = [_round_up(d, _LANE) for d in dims[1:-1]] + [dims[-1]]

        # Logical (unpadded) params, same init distribution as torch.nn.Linear.
        self.w_logical = []
        self.b_logical = []
        for fan_in, fan_out in zip(dims[:-1], dims[1:]):
            key, wkey, bkey = jax.random.split(key, 3)
            bound = 1.0 / math.sqrt(fan_in)
            # stored transposed ([in, out]) so the kernel computes x @ W + b
            w = jax.random.uniform(wkey, (fan_in, fan_out), jnp.float32,
                                   minval=-bound, maxval=bound)
            b = jax.random.uniform(bkey, (fan_out,), jnp.float32,
                                   minval=-bound, maxval=bound)
            self.w_logical.append(w)
            self.b_logical.append(b)

        # Zero-padded kernel copies (padding preserves the math exactly).
        self.w_kernel = []
        b_segs = []
        self.b_offsets = []
        self.b_widths = []
        off = 0
        for i, (w, b) in enumerate(zip(self.w_logical, self.b_logical)):
            kin, nout = self.k_dims[i], self.n_dims[i]
            wp = (jnp.zeros((kin, nout), jnp.float32)
                  .at[: w.shape[0], : w.shape[1]].set(w))
            self.w_kernel.append(wp.astype(w_dtype))
            bp = jnp.zeros((1, nout), jnp.float32).at[0, : b.shape[0]].set(b)
            b_segs.append(bp)
            self.b_offsets.append(off)
            self.b_widths.append(nout)
            off += nout
        # All hidden offsets are 128-aligned (widths are 128 multiples); pad the
        # concatenated tail to a lane multiple for a fully lane-dense DMA.
        total_pad = _round_up(off, _LANE)
        if total_pad != off:
            b_segs.append(jnp.zeros((1, total_pad - off), jnp.float32))
        self.b_all = jnp.concatenate(b_segs, axis=1)  # [1, total_pad], f32
        assert n_layers == len(self.w_kernel)

    # Pure-JAX reference (same bf16 matmul casts) for correctness checks.
    def reference(self, x):
        w_dtype = jnp.bfloat16 if self.use_bf16 else jnp.float32
        h = x.astype(jnp.float32)
        n = len(self.w_logical)
        for i, (w, b) in enumerate(zip(self.w_logical, self.b_logical)):
            y = jnp.dot(h.astype(w_dtype), w.astype(w_dtype),
                        preferred_element_type=jnp.float32) + b
            if i < n - 1:
                h = jnp.tanh(y)
            else:
                if self.st:
                    y = jnp.logaddexp(0.0, y) + 1e-6
                h = y
        return h

    def __call__(self, x):
        orig_shape = x.shape
        din = orig_shape[-1]
        assert din == self.layers_size[0]
        x2 = x.reshape(-1, din)
        B = x2.shape[0]
        n_layers = len(self.w_kernel)
        dout = self.layers_size[-1]

        # Batch tiling: big (512-row) tiles for large batches, otherwise one
        # sublane-rounded tile. Grid only over the batch axis.
        tile_b = min(_round_up(max(B, 1), _SUBLANE), 512)
        b_pad = _round_up(B, tile_b)
        if b_pad != B:  # only copy when batch needs rounding
            x2 = jnp.zeros((b_pad, din), x2.dtype).at[:B].set(x2)
        grid = (b_pad // tile_b,)

        kernel = functools.partial(
            _fused_mlp_kernel,
            n_layers=n_layers,
            st=self.st,
            b_offsets=tuple(self.b_offsets),
            b_widths=tuple(self.b_widths),
        )

        # x tile: last dim is the full (logical) input width -> no feature pad.
        in_specs = [pl.BlockSpec((tile_b, din), lambda i: (i, 0))]
        # Weights + biases: constant index_map -> resident across grid steps.
        for wp in self.w_kernel:
            in_specs.append(pl.BlockSpec(wp.shape, lambda i: (0, 0)))
        in_specs.append(pl.BlockSpec(self.b_all.shape, lambda i: (0, 0)))
        # Output: full logical width -> no post-kernel lane slice / HBM copy.
        out_specs = pl.BlockSpec((tile_b, dout), lambda i: (i, 0))

        # Explicit VMEM budget: params + double-buffered in/out tiles + slack
        # for the unrolled intermediate activations.
        param_bytes = sum(int(w.size) * w.dtype.itemsize for w in self.w_kernel)
        param_bytes += int(self.b_all.size) * 4
        io_bytes = 2 * tile_b * (din + dout) * 4
        act_bytes = 4 * tile_b * max(self.n_dims) * 4
        needed = param_bytes + io_bytes + act_bytes
        compiler_kwargs = dict(dimension_semantics=("parallel",))
        if needed > (32 << 20):
            compiler_kwargs["vmem_limit_bytes"] = min(
                _round_up(needed, 1 << 20), 64 << 20)  # cap at v7x physical

        out = pl.pallas_call(
            kernel,
            out_shape=jax.ShapeDtypeStruct((b_pad, dout), x2.dtype),
            grid=grid,
            in_specs=in_specs,
            out_specs=out_specs,
            compiler_params=pltpu.CompilerParams(**compiler_kwargs),
        )(x2, *self.w_kernel, self.b_all)

        if b_pad != B:
            out = out[:B]
        return out.reshape(*orig_shape[:-1], dout)


# --------------------------------------------------------------------------
# Demo / smoke test
# --------------------------------------------------------------------------
if __name__ == "__main__":
    layers_size = [16, 32, 32, 8]  # [in, hidden..., out]; needs len >= 4
    batch = 8

    key = jax.random.PRNGKey(0)
    key, xkey = jax.random.split(key)
    x = jax.random.normal(xkey, (batch, layers_size[0]), dtype=jnp.float32)

    # st=False path
    model = FnnPallas(layers_size, st=False, dropout=False, key=key)
    out = jax.block_until_ready(model(x))
    assert out.shape == (batch, layers_size[-1]), out.shape
    assert bool(jnp.all(jnp.isfinite(out)))
    ref = model.reference(x)
    assert bool(jnp.allclose(out, ref, atol=1e-2, rtol=1e-2)), (
        float(jnp.max(jnp.abs(out - ref))))

    # st=True (softplus + 1e-6) path
    model_st = FnnPallas(layers_size, st=True, dropout=False, key=key)
    out_st = jax.block_until_ready(model_st(x))
    assert bool(jnp.all(out_st > 0.0))  # softplus(.) + 1e-6 is strictly positive
    ref_st = model_st.reference(x)
    assert bool(jnp.allclose(out_st, ref_st, atol=1e-2, rtol=1e-2))

    # Non-sublane-aligned batch (exercises the conditional batch-padding path)
    key, xkey2 = jax.random.split(key)
    x2 = jax.random.normal(xkey2, (20, layers_size[0]), dtype=jnp.float32)
    out2 = jax.block_until_ready(model(x2))
    ref2 = model.reference(x2)
    assert out2.shape == (20, layers_size[-1])
    assert bool(jnp.allclose(out2, ref2, atol=1e-2, rtol=1e-2))

    print("KERNEL_OK")
</pallas_src>

<mosaic_0001>
module attributes {stable_mosaic.version = 11 : i64} {
  func.func @_fused_mlp_kernel(%arg0: i32, %arg1: memref<8x16xf32, #tpu.memory_space<vmem>>, %arg2: memref<16x128xbf16, #tpu.memory_space<vmem>>, %arg3: memref<128x128xbf16, #tpu.memory_space<vmem>>, %arg4: memref<128x8xbf16, #tpu.memory_space<vmem>>, %arg5: memref<1x384xf32, #tpu.memory_space<vmem>>, %arg6: memref<8x8xf32, #tpu.memory_space<vmem>>) attributes {dimension_semantics = [#tpu.dimension_semantics<parallel>], iteration_bounds = array<i64: 1>, scalar_prefetch = 0 : i64, scratch_operands = 0 : i64, tpu.core_type = #tpu.core_type<tc>, window_params = [{transform_indices = @transform_0, window_bounds = array<i64: 8, 16>}, {pipeline_mode = #tpu.pipeline_mode<synchronous>, transform_indices = @transform_1, window_bounds = array<i64: 16, 128>}, {pipeline_mode = #tpu.pipeline_mode<synchronous>, transform_indices = @transform_2, window_bounds = array<i64: 128, 128>}, {pipeline_mode = #tpu.pipeline_mode<synchronous>, transform_indices = @transform_3, window_bounds = array<i64: 128, 8>}, {pipeline_mode = #tpu.pipeline_mode<synchronous>, transform_indices = @transform_4, window_bounds = array<i64: 1, 384>}, {transform_indices = @transform_5, window_bounds = array<i64: 8, 8>}]} {
    %c0 = arith.constant 0 : index
    %c0_0 = arith.constant 0 : index
    %0 = vector.load %arg1[%c0, %c0_0] : memref<8x16xf32, #tpu.memory_space<vmem>>, vector<8x16xf32>
    %c0_1 = arith.constant 0 : index
    %c0_2 = arith.constant 0 : index
    %1 = vector.load %arg2[%c0_1, %c0_2] : memref<16x128xbf16, #tpu.memory_space<vmem>>, vector<16x128xbf16>
    %2 = arith.truncf %0 : vector<8x16xf32> to vector<8x16xbf16>
    %cst = arith.constant dense<0.000000e+00> : vector<8x128xf32>
    %3 = tpu.matmul %2, %1, %cst {dimension_numbers = #tpu.dot_dimension_numbers<[1], [0], [0], [1], [0, 0, 1, 1], [], []>} : vector<8x16xbf16>, vector<16x128xbf16>, vector<8x128xf32> -> vector<8x128xf32>
    %c0_3 = arith.constant 0 : index
    %c0_4 = arith.constant 0 : index
    %4 = vector.load %arg5[%c0_3, %c0_4] : memref<1x384xf32, #tpu.memory_space<vmem>>, vector<1x128xf32>
    %5 = vector.broadcast %4 : vector<1x128xf32> to vector<8x128xf32>
    %6 = arith.addf %3, %5 : vector<8x128xf32>
    %7 = math.tanh %6 : vector<8x128xf32>
    %c0_5 = arith.constant 0 : index
    %c0_6 = arith.constant 0 : index
    %8 = vector.load %arg3[%c0_5, %c0_6] : memref<128x128xbf16, #tpu.memory_space<vmem>>, vector<128x128xbf16>
    %9 = arith.truncf %7 : vector<8x128xf32> to vector<8x128xbf16>
    %cst_7 = arith.constant dense<0.000000e+00> : vector<8x128xf32>
    %10 = tpu.matmul %9, %8, %cst_7 {dimension_numbers = #tpu.dot_dimension_numbers<[1], [0], [0], [1], [0, 0, 1, 1], [], []>} : vector<8x128xbf16>, vector<128x128xbf16>, vector<8x128xf32> -> vector<8x128xf32>
    %c0_8 = arith.constant 0 : index
    %c128 = arith.constant 128 : index
    %11 = vector.load %arg5[%c0_8, %c128] : memref<1x384xf32, #tpu.memory_space<vmem>>, vector<1x128xf32>
    %12 = vector.broadcast %11 : vector<1x128xf32> to vector<8x128xf32>
    %13 = arith.addf %10, %12 : vector<8x128xf32>
    %14 = math.tanh %13 : vector<8x128xf32>
    %c0_9 = arith.constant 0 : index
    %c0_10 = arith.constant 0 : index
    %15 = vector.load %arg4[%c0_9, %c0_10] : memref<128x8xbf16, #tpu.memory_space<vmem>>, vector<128x8xbf16>
    %16 = arith.truncf %14 : vector<8x128xf32> to vector<8x128xbf16>
    %cst_11 = arith.constant dense<0.000000e+00> : vector<8x8xf32>
    %17 = tpu.matmul %16, %15, %cst_11 {dimension_numbers = #tpu.dot_dimension_numbers<[1], [0], [0], [1], [0, 0, 1, 1], [], []>} : vector<8x128xbf16>, vector<128x8xbf16>, vector<8x8xf32> -> vector<8x8xf32>
    %c0_12 = arith.constant 0 : index
    %c256 = arith.constant 256 : index
    %18 = vector.load %arg5[%c0_12, %c256] : memref<1x384xf32, #tpu.memory_space<vmem>>, vector<1x8xf32>
    %19 = vector.broadcast %18 : vector<1x8xf32> to vector<8x8xf32>
    %20 = arith.addf %17, %19 : vector<8x8xf32>
    %c0_13 = arith.constant 0 : index
    %c0_14 = arith.constant 0 : index
    %21 = vector.load %arg6[%c0_13, %c0_14] : memref<8x8xf32, #tpu.memory_space<vmem>>, vector<8x8xf32>
    tpu.vector_store %arg6[%c0_13, %c0_14], %20 {strides = array<i32>} : memref<8x8xf32, #tpu.memory_space<vmem>>, vector<8x8xf32>,
    return
  }
  func.func @transform_0(%arg0: i32) -> (i32, i32) {
    %c0_i32 = arith.constant 0 : i32
    %c0_i32_0 = arith.constant 0 : i32
    return %arg0, %c0_i32 : i32, i32
  }
  func.func @transform_1(%arg0: i32) -> (i32, i32) {
    %c0_i32 = arith.constant 0 : i32
    %c0_i32_0 = arith.constant 0 : i32
    %c0_i32_1 = arith.constant 0 : i32
    return %c0_i32, %c0_i32_0 : i32, i32
  }
  func.func @transform_2(%arg0: i32) -> (i32, i32) {
    %c0_i32 = arith.constant 0 : i32
    %c0_i32_0 = arith.constant 0 : i32
    %c0_i32_1 = arith.constant 0 : i32
    return %c0_i32, %c0_i32_0 : i32, i32
  }
  func.func @transform_3(%arg0: i32) -> (i32, i32) {
    %c0_i32 = arith.constant 0 : i32
    %c0_i32_0 = arith.constant 0 : i32
    %c0_i32_1 = arith.constant 0 : i32
    return %c0_i32, %c0_i32_0 : i32, i32
  }
  func.func @transform_4(%arg0: i32) -> (i32, i32) {
    %c0_i32 = arith.constant 0 : i32
    %c0_i32_0 = arith.constant 0 : i32
    %c0_i32_1 = arith.constant 0 : i32
    return %c0_i32, %c0_i32_0 : i32, i32
  }
  func.func @transform_5(%arg0: i32) -> (i32, i32) {
    %c0_i32 = arith.constant 0 : i32
    %c0_i32_0 = arith.constant 0 : i32
    return %arg0, %c0_i32 : i32, i32
  }
}

</mosaic_0001>

<llo_original>
// kernel: tpu_custom_call.1
$region0: #{tpu_custom_call.1}
  #allocation0 [shape = 'u32[]', space=smem, size = 0x4, offset = 0x4, fixed_abs, tag = 'smem constant byte address 0x4 - core index']
  #allocation1 [shape = 'u32[144,128]{1,0:T(1,128)}', space=vmem, size = 0x12000, scoped, tag = 'internal scratch']
  %s0 = inlined_call_operand.vmem [shape: f32[8,16], index: 0, kind: input, shape index: {}]
  %s1 = inlined_call_operand.hbm [shape: bf16[16,128], index: 1, kind: input, shape index: {}]
  %s2 = inlined_call_operand.vmem [shape: bf16[128,128], index: 2, kind: input, shape index: {}]
  %s3 = inlined_call_operand.vmem [shape: bf16[128,8], index: 3, kind: input, shape index: {}]
  %s4 = inlined_call_operand.vmem [shape: f32[1,384], index: 4, kind: input, shape index: {}]
  %s5 = inlined_call_operand.hbm [shape: f32[8,8], index: 5, kind: output, shape index: {}]
  %s6 = sld [smem:[#allocation0]]
  $region34: #{tpu_custom_call.1} parent=0
    _
  %s8 = ssub.s32 1, %s6
  %s9 = scalar_select 0, %s8, %s6
  $region1: #{tpu_custom_call.1} parent=0
    #allocation2 [shape = 'u8[4096]{0}', space=vmem, size = 0x1000, scoped, tag = 'input window, operand 1, single buffered']
    #allocation3 [shape = 's32[1]{0}', space=sflag, size = 0x4, scoped, tag = 'scoped memory for tpu_custom_call.1']
    #allocation4 [shape = 's32[1]{0}', space=sflag, size = 0x4, scoped, tag = 'scoped memory for tpu_custom_call.1']
    #allocation5 [shape = 'u8[4096]{0}', space=vmem, size = 0x1000, scoped, tag = 'output window, operand 0, single buffered']
    %10 = vsyncpa [#allocation3], 0
    %11 = vsyncpa [#allocation4], 0
    // Predicated region
    $region2: #{tpu_custom_call.1} parent=1 // pred_check
      _
    $region3: #{tpu_custom_call.1} parent=1 // pred_check_branch
      %13 = sbr.rel (0) target = $region5
    $region4: #{tpu_custom_call.1} parent=1 // pred_region
      _
    $region5: #{tpu_custom_call.1} parent=1 // pred_fallthru
      _
    // Predicated region
    $region6: #{tpu_custom_call.1} parent=1 // pred_check
      _
    $region7: #{tpu_custom_call.1} parent=1 // pred_check_branch
      %15 = sbr.rel (0) target = $region9
    $region8: #{tpu_custom_call.1} parent=1 // pred_region
      %s17 = ssub.s32 128, 128
      %18 = vsyncadd [#allocation3], %s17
      %s19 = sshll.u32 [#allocation2], 4
      %s20 = int_to_ptr.vmem [resolvable:$true] %s19
      %25 = dma.hbm_to_vmem [thread:$0]  %s1, 128, %s20, [#allocation3], 64, 64, 4
    $region9: #{tpu_custom_call.1} parent=1 // pred_fallthru
      _
    // Predicated region
    $region10: #{tpu_custom_call.1} parent=1 // pred_check
      _
    $region11: #{tpu_custom_call.1} parent=1 // pred_check_branch
      %27 = sbr.rel (0) target = $region13
    $region12: #{tpu_custom_call.1} parent=1 // pred_region
      _
    $region13: #{tpu_custom_call.1} parent=1 // pred_fallthru
      _
    // Predicated region
    $region14: #{tpu_custom_call.1} parent=1 // pred_check
      _
    $region15: #{tpu_custom_call.1} parent=1 // pred_check_branch
      %29 = sbr.rel (0) target = $region17
    $region16: #{tpu_custom_call.1} parent=1 // pred_region
      _
    $region17: #{tpu_custom_call.1} parent=1 // pred_fallthru
      _
    // Predicated region
    $region18: #{tpu_custom_call.1} parent=1 // pred_check
      _
    $region19: #{tpu_custom_call.1} parent=1 // pred_check_branch
      %31 = sbr.rel (0) target = $region21
    $region20: #{tpu_custom_call.1} parent=1 // pred_region
      _
    $region21: #{tpu_custom_call.1} parent=1 // pred_fallthru
      _
    // Predicated region
    $region22: #{tpu_custom_call.1} parent=1 // pred_check
      _
    $region23: #{tpu_custom_call.1} parent=1 // pred_check_branch
      %33 = sbr.rel (0) target = $region25
    $region24: #{tpu_custom_call.1} parent=1 // pred_region
      %34 = dma.done [#allocation3], 128
    $region25: #{tpu_custom_call.1} parent=1 // pred_fallthru
      _
    %v36 = vld [vmem:[%s0] sm:$0xff]
    %v37 = vld [vmem:[#allocation2] sm:$0xf]
    %v38 = vld [vmem:[#allocation2 + $0x4] sm:$0xf]
    %v39 = vpack.c.bf16 %v36, %v36
    %v40 = vld [vmem:[%s4] sm:$0x1]
    %v42 = vlaneseq
    %v43 = vshrl.u32 %v42, 7
    %v44 = vsub.s32 0, %v43
    %v45 = vrot.slane %v40, %v44
    %v49 = vunpack.c.l.b16 %v37
    %v50 = vunpack.c.l.b16 %v38
    %v51 = vpack.c.b16 %v50, %v49
    %vm53 = vcmask 130048
    %v55 = vsel %vm53, %v39, 0
    %57 = vmatprep.subr.bf16.mxu0 0
    %58 = vmatpush1.bf16.msra.mxu0 %v51
    %59 = vmatprep.subr.bf16.mxu0 0
    %60 = vmatpush1.bf16.msra.mxu0 0
    %61 = vmatprep.subr.bf16.mxu0 0
    %62 = vmatpush1.bf16.msra.mxu0 0
    %63 = vmatprep.subr.bf16.mxu0 0
    %64 = vmatpush1.bf16.msra.mxu0 0
    %65 = vmatprep.subr.bf16.mxu0 0
    %66 = vmatpush1.bf16.msra.mxu0 0
    %67 = vmatprep.subr.bf16.mxu0 0
    %68 = vmatpush1.bf16.msra.mxu0 0
    %69 = vmatprep.subr.bf16.mxu0 0
    %70 = vmatpush1.bf16.msra.mxu0 0
    %71 = vmatprep.subr.bf16.mxu0 0
    %72 = vmatpush1.bf16.msra.mxu0 0
    %73 = vmatprep.subr.bf16.mxu0 0
    %74 = vmatpush1.bf16.msra.mxu0 0
    %75 = vmatprep.subr.bf16.mxu0 0
    %76 = vmatpush1.bf16.msra.mxu0 0
    %77 = vmatprep.subr.bf16.mxu0 0
    %78 = vmatpush1.bf16.msra.mxu0 0
    %79 = vmatprep.subr.bf16.mxu0 0
    %80 = vmatpush1.bf16.msra.mxu0 0
    %81 = vmatprep.subr.bf16.mxu0 0
    %82 = vmatpush1.bf16.msra.mxu0 0
    %83 = vmatprep.subr.bf16.mxu0 0
    %84 = vmatpush1.bf16.msra.mxu0 0
    %85 = vmatprep.subr.bf16.mxu0 0
    %86 = vmatpush1.bf16.msra.mxu0 0
    %87 = vmatprep.subr.bf16.mxu0 0
    %88 = vmatpush1.bf16.msra.mxu0 0
    %89 = vmatprep.mubr.bf16.mxu0 0
    %90 = vmatmul.mubr.bf16.gmra.mrb[0].mxu0 %v55
    %v91 = vpop.f32.mrb[0].mxu0
    %v92 = vadd.f32 %v45, %v91
    %v93 = vpop.f32.mrb[0].mxu0
    %v94 = vpop.f32.mrb[0].mxu0
    %v95 = vpop.f32.mrb[0].mxu0
    %96 = vdwg.mxu0
    %v97 = vtanh.pop %v92
    %v98 = vld [vmem:[%s2] sm:$0xf]
    %v99 = vld [vmem:[%s2 + $0x4] sm:$0xf]
    %v100 = vld [vmem:[%s2 + $0x8] sm:$0xf]
    %v101 = vld [vmem:[%s2 + $0xc] sm:$0xf]
    %v102 = vld [vmem:[%s2 + $0x10] sm:$0xf]
    %v103 = vld [vmem:[%s2 + $0x14] sm:$0xf]
    %v104 = vld [vmem:[%s2 + $0x18] sm:$0xf]
    %v105 = vld [vmem:[%s2 + $0x1c] sm:$0xf]
    %v106 = vld [vmem:[%s2 + $0x20] sm:$0xf]
    %v107 = vld [vmem:[%s2 + $0x24] sm:$0xf]
    %v108 = vld [vmem:[%s2 + $0x28] sm:$0xf]
    %v109 = vld [vmem:[%s2 + $0x2c] sm:$0xf]
    %v110 = vld [vmem:[%s2 + $0x30] sm:$0xf]
    %v111 = vld [vmem:[%s2 + $0x34] sm:$0xf]
    %v112 = vld [vmem:[%s2 + $0x38] sm:$0xf]
    %v113 = vld [vmem:[%s2 + $0x3c] sm:$0xf]
    %v114 = vpack.c.bf16 %v97, %v97
    %v115 = vld [vmem:[%s4 + $0x1] sm:$0x1]
    %v117 = vlaneseq
    %v118 = vshrl.u32 %v117, 7
    %v119 = vsub.s32 0, %v118
    %v120 = vrot.slane %v115, %v119
    %v138 = vunpack.c.l.b16 %v98
    %v139 = vunpack.c.l.b16 %v99
    %v140 = vunpack.c.l.b16 %v100
    %v141 = vunpack.c.l.b16 %v101
    %v142 = vunpack.c.l.b16 %v102
    %v143 = vunpack.c.l.b16 %v103
    %v144 = vunpack.c.l.b16 %v104
    %v145 = vunpack.c.l.b16 %v105
    %v146 = vunpack.c.l.b16 %v106
    %v147 = vunpack.c.l.b16 %v107
    %v148 = vunpack.c.l.b16 %v108
    %v149 = vunpack.c.l.b16 %v109
    %v150 = vunpack.c.l.b16 %v110
    %v151 = vunpack.c.l.b16 %v111
    %v152 = vunpack.c.l.b16 %v112
    %v153 = vunpack.c.l.b16 %v113
    %v154 = vpack.c.b16 %v139, %v138
    %v155 = vpack.c.b16 %v141, %v140
    %v156 = vpack.c.b16 %v143, %v142
    %v157 = vpack.c.b16 %v145, %v144
    %v158 = vpack.c.b16 %v147, %v146
    %v159 = vpack.c.b16 %v149, %v148
    %v160 = vpack.c.b16 %v151, %v150
    %v161 = vpack.c.b16 %v153, %v152
    %170 = vmatprep.subr.bf16.mxu0 0
    %171 = vmatpush1.bf16.msra.mxu0 %v154
    %172 = vmatprep.subr.bf16.mxu0 0
    %173 = vmatpush1.bf16.msra.mxu0 %v155
    %174 = vmatprep.subr.bf16.mxu0 0
    %175 = vmatpush1.bf16.msra.mxu0 %v156
    %176 = vmatprep.subr.bf16.mxu0 0
    %177 = vmatpush1.bf16.msra.mxu0 %v157
    %178 = vmatprep.subr.bf16.mxu0 0
    %179 = vmatpush1.bf16.msra.mxu0 %v158
    %180 = vmatprep.subr.bf16.mxu0 0
    %181 = vmatpush1.bf16.msra.mxu0 %v159
    %182 = vmatprep.subr.bf16.mxu0 0
    %183 = vmatpush1.bf16.msra.mxu0 %v160
    %184 = vmatprep.subr.bf16.mxu0 0
    %185 = vmatpush1.bf16.msra.mxu0 %v161
    %186 = vmatprep.subr.bf16.mxu0 0
    %187 = vmatpush1.bf16.msra.mxu0 0
    %188 = vmatprep.subr.bf16.mxu0 0
    %189 = vmatpush1.bf16.msra.mxu0 0
    %190 = vmatprep.subr.bf16.mxu0 0
    %191 = vmatpush1.bf16.msra.mxu0 0
    %192 = vmatprep.subr.bf16.mxu0 0
    %193 = vmatpush1.bf16.msra.mxu0 0
    %194 = vmatprep.subr.bf16.mxu0 0
    %195 = vmatpush1.bf16.msra.mxu0 0
    %196 = vmatprep.subr.bf16.mxu0 0
    %197 = vmatpush1.bf16.msra.mxu0 0
    %198 = vmatprep.subr.bf16.mxu0 0
    %199 = vmatpush1.bf16.msra.mxu0 0
    %200 = vmatprep.subr.bf16.mxu0 0
    %201 = vmatpush1.bf16.msra.mxu0 0
    %202 = vmatprep.mubr.bf16.mxu0 0
    %203 = vmatmul.mubr.bf16.gmra.mrb[0].mxu0 %v114
    %v204 = vpop.f32.mrb[0].mxu0
    %v205 = vadd.f32 %v120, %v204
    %v206 = vpop.f32.mrb[0].mxu0
    %v207 = vpop.f32.mrb[0].mxu0
    %v208 = vpop.f32.mrb[0].mxu0
    %209 = vdwg.mxu0
    %v210 = vtanh.pop %v205
    %v211 = vld [vmem:[%s3] sm:$0xf]
    %v212 = vld [vmem:[%s3 + $0x4] sm:$0xf]
    %v213 = vld [vmem:[%s3 + $0x8] sm:$0xf]
    %v214 = vld [vmem:[%s3 + $0xc] sm:$0xf]
    %v215 = vld [vmem:[%s3 + $0x10] sm:$0xf]
    %v216 = vld [vmem:[%s3 + $0x14] sm:$0xf]
    %v217 = vld [vmem:[%s3 + $0x18] sm:$0xf]
    %v218 = vld [vmem:[%s3 + $0x1c] sm:$0xf]
    %v219 = vld [vmem:[%s3 + $0x20] sm:$0xf]
    %v220 = vld [vmem:[%s3 + $0x24] sm:$0xf]
    %v221 = vld [vmem:[%s3 + $0x28] sm:$0xf]
    %v222 = vld [vmem:[%s3 + $0x2c] sm:$0xf]
    %v223 = vld [vmem:[%s3 + $0x30] sm:$0xf]
    %v224 = vld [vmem:[%s3 + $0x34] sm:$0xf]
    %v225 = vld [vmem:[%s3 + $0x38] sm:$0xf]
    %v226 = vld [vmem:[%s3 + $0x3c] sm:$0xf]
    %v227 = vpack.c.bf16 %v210, %v210
    %v228 = vld [vmem:[%s4 + $0x2] sm:$0x1]
    %v230 = vlaneseq
    %v231 = vshrl.u32 %v230, 7
    %v232 = vsub.s32 0, %v231
    %v233 = vrot.slane %v228, %v232
    %v251 = vunpack.c.l.b16 %v211
    %v252 = vunpack.c.l.b16 %v212
    %v253 = vunpack.c.l.b16 %v213
    %v254 = vunpack.c.l.b16 %v214
    %v255 = vunpack.c.l.b16 %v215
    %v256 = vunpack.c.l.b16 %v216
    %v257 = vunpack.c.l.b16 %v217
    %v258 = vunpack.c.l.b16 %v218
    %v259 = vunpack.c.l.b16 %v219
    %v260 = vunpack.c.l.b16 %v220
    %v261 = vunpack.c.l.b16 %v221
    %v262 = vunpack.c.l.b16 %v222
    %v263 = vunpack.c.l.b16 %v223
    %v264 = vunpack.c.l.b16 %v224
    %v265 = vunpack.c.l.b16 %v225
    %v266 = vunpack.c.l.b16 %v226
    %v267 = vpack.c.b16 %v252, %v251
    %v268 = vpack.c.b16 %v254, %v253
    %v269 = vpack.c.b16 %v256, %v255
    %v270 = vpack.c.b16 %v258, %v257
    %v271 = vpack.c.b16 %v260, %v259
    %v272 = vpack.c.b16 %v262, %v261
    %v273 = vpack.c.b16 %v264, %v263
    %v274 = vpack.c.b16 %v266, %v265
    %283 = vmatprep.subr.bf16.mxu0 0
    %284 = vmatpush1.bf16.msra.mxu0 %v267
    %285 = vmatprep.subr.bf16.mxu0 0
    %286 = vmatpush1.bf16.msra.mxu0 %v268
    %287 = vmatprep.subr.bf16.mxu0 0
    %288 = vmatpush1.bf16.msra.mxu0 %v269
    %289 = vmatprep.subr.bf16.mxu0 0
    %290 = vmatpush1.bf16.msra.mxu0 %v270
    %291 = vmatprep.subr.bf16.mxu0 0
    %292 = vmatpush1.bf16.msra.mxu0 %v271
    %293 = vmatprep.subr.bf16.mxu0 0
    %294 = vmatpush1.bf16.msra.mxu0 %v272
    %295 = vmatprep.subr.bf16.mxu0 0
    %296 = vmatpush1.bf16.msra.mxu0 %v273
    %297 = vmatprep.subr.bf16.mxu0 0
    %298 = vmatpush1.bf16.msra.mxu0 %v274
    %299 = vmatprep.subr.bf16.mxu0 0
    %300 = vmatpush1.bf16.msra.mxu0 0
    %301 = vmatprep.subr.bf16.mxu0 0
    %302 = vmatpush1.bf16.msra.mxu0 0
    %303 = vmatprep.subr.bf16.mxu0 0
    %304 = vmatpush1.bf16.msra.mxu0 0
    %305 = vmatprep.subr.bf16.mxu0 0
    %306 = vmatpush1.bf16.msra.mxu0 0
    %307 = vmatprep.subr.bf16.mxu0 0
    %308 = vmatpush1.bf16.msra.mxu0 0
    %309 = vmatprep.subr.bf16.mxu0 0
    %310 = vmatpush1.bf16.msra.mxu0 0
    %311 = vmatprep.subr.bf16.mxu0 0
    %312 = vmatpush1.bf16.msra.mxu0 0
    %313 = vmatprep.subr.bf16.mxu0 0
    %314 = vmatpush1.bf16.msra.mxu0 0
    %315 = vmatprep.mubr.bf16.mxu0 0
    %316 = vmatmul.mubr.bf16.gmra.mrb[0].mxu0 %v227
    %v317 = vpop.f32.mrb[0].mxu0
    %v318 = vadd.f32 %v233, %v317
    %v319 = vpop.f32.mrb[0].mxu0
    %v320 = vpop.f32.mrb[0].mxu0
    %v321 = vpop.f32.mrb[0].mxu0
    %322 = vdwg.mxu0
    %vm323 = vcmask 64512
    %324 = vst.msk [vmem:[#allocation5] sm:$0xff] %vm323, %v318
    // Predicated region
    $region26: #{tpu_custom_call.1} parent=1 // pred_check
      _
    $region27: #{tpu_custom_call.1} parent=1 // pred_check_branch
      %326 = sbr.rel (0) target = $region29
    $region28: #{tpu_custom_call.1} parent=1 // pred_region
      %s328 = ssub.s32 128, 128
      %329 = vsyncadd [#allocation4], %s328
      %s331 = sshll.u32 [#allocation5], 4
      %s332 = int_to_ptr.vmem [resolvable:$true] %s331
      %334 = dma.vmem_to_hbm [thread:$0]  %s332, 128, %s5, [#allocation4]
    $region29: #{tpu_custom_call.1} parent=1 // pred_fallthru
      _
    // Predicated region
    $region30: #{tpu_custom_call.1} parent=1 // pred_check
      _
    $region31: #{tpu_custom_call.1} parent=1 // pred_check_branch
      %336 = sbr.rel (0) target = $region33
    $region32: #{tpu_custom_call.1} parent=1 // pred_region
      %337 = dma.done [#allocation4], 128
    $region33: #{tpu_custom_call.1} parent=1 // pred_fallthru
      _
    %338 = vsyncpa [#allocation3], 1
    %339 = vsyncpa [#allocation4], 1

</llo_original>
